<compile_context>
chip_gen: v7x
topology: tpu7x:2x2x1
jax: 0.10.0
libtpu: 0.0.40
codegen_flags: <defaults>
</compile_context>

<pallas_src>
import math

import jax
import jax.numpy as jnp
from jax.experimental import pallas as pl
from jax.experimental.pallas import tpu as pltpu

_LANE = 128


def _gelu_kernel(x_ref, o_ref):
    x = x_ref[...].astype(jnp.float32)
    # x * sigmoid(1.702 * x): exp/recip run on the EUP slot, free under the
    # HBM-bandwidth roofline of this elementwise op.
    o_ref[...] = (x * jax.nn.sigmoid(1.702 * x)).astype(o_ref.dtype)


def _chip_params():
    """Per-generation tiling knobs: (block_bytes, vmem_limit_bytes, multi_tc)."""
    vmem_cap = None
    try:
        vmem_cap = getattr(pltpu.get_tpu_info(), "vmem_capacity_bytes", None)
    except Exception:
        vmem_cap = None
    if vmem_cap is not None and vmem_cap <= (64 << 20):
        # v7x-class: 64 MiB physical VMEM, ~3.2 TB/s HBM, 2 TensorCores/chip.
        # Big blocks amortize the ~0.35 us/grid-step tax (a ~25% relative cost
        # at 2 MiB blocks on v7x).  8 MiB x 2 operands x 2 buffers = 32 MiB
        # live, which exceeds the default scoped limit -> raise to 48 MiB
        # (still comfortably under 64 MiB physical).
        return 8 << 20, 48 << 20, True
    # v5e / v6e: single TensorCore, 128 MiB physical VMEM.  4 MiB blocks give
    # 16 MiB live; raise the scoped limit past v5e's 16 MiB default.
    return 4 << 20, 32 << 20, False


def _pick_lane_width(n, w_cap, min_rows):
    """Largest multiple-of-128 divisor of n that is <= w_cap, preferring widths
    that leave at least `min_rows` rows (full sublane packing / TC splitting).
    Returns None when n is not a multiple of 128."""
    if n % _LANE != 0:
        return None
    m = n // _LANE
    best = None
    for d in range(min(max(1, w_cap // _LANE), m), 0, -1):
        if m % d == 0:
            w = d * _LANE
            if best is None:
                best = w
            if n // w >= min_rows:
                return w
    return best


def _best_ragged_view(shape, n, sublane):
    """For n not divisible by 128: collapse trailing dims into a (rows, cols)
    view minimizing (sublane x lane) padding waste, preferring wider cols."""
    if not shape:
        return 1, 1
    best = None
    for k in range(len(shape)):
        cols = math.prod(shape[k:])
        rows = n // cols
        waste = (pl.cdiv(rows, sublane) * sublane / rows) * (
            pl.cdiv(cols, _LANE) * _LANE / cols)
        if best is None or waste < best[0] - 1e-9:
            best = (waste, rows, cols)
    return best[1], best[2]


def gelu_pallas(x: jax.Array) -> jax.Array:
    orig_shape = x.shape
    orig_dtype = x.dtype
    n = x.size
    if n == 0:                       # degenerate: avoid a zero-trip grid
        return x

    itemsize = jnp.dtype(orig_dtype).itemsize
    sublane = {4: 8, 2: 16, 1: 32}.get(itemsize, 8)

    block_bytes, vmem_limit, multi_tc = _chip_params()
    max_block_elems = max(1, block_bytes // itemsize)

    # ---- 2-D view (row-major reshape only; no data movement) ---------------
    w_cap = max(_LANE, block_bytes // (itemsize * sublane))
    min_rows = sublane * (2 if multi_tc else 1)
    w = _pick_lane_width(n, w_cap, min_rows)
    if w is not None:
        rows, cols = n // w, w                       # lane-dense: unmasked stores
    else:
        rows, cols = _best_ragged_view(orig_shape, n, sublane)
    x2 = x.reshape(rows, cols)

    # ---- block shape --------------------------------------------------------
    if cols * min(rows, sublane) <= max_block_elems:
        # Full-width row bands: every block is a single contiguous HBM range.
        bc = cols
        if rows * cols <= max_block_elems:
            br = rows
        else:
            br = (max_block_elems // cols) // sublane * sublane
            br = max(sublane, min(br, rows))
    else:
        # Very wide rows (ragged fallback only): split the lane dim in
        # 128-multiples so stores stay unmasked except the trailing block.
        br = min(rows, sublane)
        bc = (max_block_elems // br) // _LANE * _LANE
        bc = max(_LANE, min(bc, cols))

    row_steps = pl.cdiv(rows, br)
    col_steps = pl.cdiv(cols, bc)

    # ---- v7x only: keep the parallel row axis evenly splittable across the
    # two TensorCores (on single-TC v5e/v6e extra steps are pure overhead).
    if multi_tc and col_steps == 1 and rows > sublane and row_steps % 2 == 1:
        for cand in range(max(1, br // sublane), 0, -1):
            cbr = cand * sublane
            if pl.cdiv(rows, cbr) % 2 == 0:
                br = cbr
                row_steps = pl.cdiv(rows, cbr)
                break

    # ---- grid / specs -------------------------------------------------------
    if col_steps == 1:
        grid = (row_steps,)
        idx = lambda i: (i, 0)
        dim_sem = ("parallel",)
    else:
        grid = (row_steps, col_steps)
        idx = lambda i, j: (i, j)
        dim_sem = ("parallel", "parallel")

    out = pl.pallas_call(
        _gelu_kernel,
        out_shape=jax.ShapeDtypeStruct((rows, cols), orig_dtype),
        grid_spec=pltpu.PrefetchScalarGridSpec(
            num_scalar_prefetch=0,
            grid=grid,
            in_specs=[pl.BlockSpec((br, bc), idx)],
            out_specs=pl.BlockSpec((br, bc), idx),
        ),
        compiler_params=pltpu.CompilerParams(
            dimension_semantics=dim_sem,
            vmem_limit_bytes=vmem_limit,
        ),
    )(x2)

    return out.reshape(orig_shape)


def gelu_reference(x: jax.Array) -> jax.Array:
    xf = x.astype(jnp.float32)
    return (xf * jax.nn.sigmoid(1.702 * xf)).astype(x.dtype)


if __name__ == "__main__":
    key = jax.random.PRNGKey(0)

    # Typical small activation tensor: [batch, hidden] (lane-dense flat path).
    x = jax.random.normal(key, (8, 32), dtype=jnp.float32)
    y = jax.block_until_ready(gelu_pallas(x))
    assert y.shape == x.shape and y.dtype == x.dtype
    assert jnp.allclose(y, gelu_reference(x), atol=1e-5, rtol=1e-5)

    # Odd shape exercising the ragged / non-128-divisible fallback path.
    x_odd = jax.random.normal(jax.random.PRNGKey(0), (4, 7, 5), dtype=jnp.float32)
    y_odd = jax.block_until_ready(gelu_pallas(x_odd))
    assert y_odd.shape == x_odd.shape and y_odd.dtype == x_odd.dtype
    assert jnp.allclose(y_odd, gelu_reference(x_odd), atol=1e-5, rtol=1e-5)

    # Larger lane-dense tensor exercising the multi-step (tiled) path.
    x_big = jax.random.normal(jax.random.PRNGKey(0), (256, 512), dtype=jnp.float32)
    y_big = jax.block_until_ready(gelu_pallas(x_big))
    assert jnp.allclose(y_big, gelu_reference(x_big), atol=1e-5, rtol=1e-5)

    print("KERNEL_OK")
</pallas_src>

<mosaic_0001>
module attributes {stable_mosaic.version = 11 : i64} {
  func.func @_gelu_kernel(%arg0: i32, %arg1: memref<1x256xf32, #tpu.memory_space<vmem>>, %arg2: memref<1x256xf32, #tpu.memory_space<vmem>>) attributes {dimension_semantics = [#tpu.dimension_semantics<parallel>], iteration_bounds = array<i64: 1>, scalar_prefetch = 0 : i64, scratch_operands = 0 : i64, tpu.core_type = #tpu.core_type<tc>, window_params = [{transform_indices = @transform_0, window_bounds = array<i64: 1, 256>}, {transform_indices = @transform_1, window_bounds = array<i64: 1, 256>}]} {
    %c0 = arith.constant 0 : index
    %c0_0 = arith.constant 0 : index
    %0 = vector.load %arg1[%c0, %c0_0] : memref<1x256xf32, #tpu.memory_space<vmem>>, vector<1x256xf32>
    %cst = arith.constant 1.702000e+00 : f32
    %1 = vector.broadcast %cst : f32 to vector<1x256xf32>
    %2 = arith.mulf %1, %0 : vector<1x256xf32>
    %3 = arith.negf %2 : vector<1x256xf32>
    %4 = math.exp %3 : vector<1x256xf32>
    %cst_1 = arith.constant 1.000000e+00 : f32
    %5 = vector.broadcast %cst_1 : f32 to vector<1x256xf32>
    %6 = arith.addf %5, %4 : vector<1x256xf32>
    %7 = arith.divf %5, %6 : vector<1x256xf32>
    %8 = arith.mulf %0, %7 : vector<1x256xf32>
    %c0_2 = arith.constant 0 : index
    %c0_3 = arith.constant 0 : index
    %9 = vector.load %arg2[%c0_2, %c0_3] : memref<1x256xf32, #tpu.memory_space<vmem>>, vector<1x256xf32>
    tpu.vector_store %arg2[%c0_2, %c0_3], %8 {strides = array<i32>} : memref<1x256xf32, #tpu.memory_space<vmem>>, vector<1x256xf32>,
    return
  }
  func.func @transform_0(%arg0: i32) -> (i32, i32) {
    %c0_i32 = arith.constant 0 : i32
    %c0_i32_0 = arith.constant 0 : i32
    return %arg0, %c0_i32 : i32, i32
  }
  func.func @transform_1(%arg0: i32) -> (i32, i32) {
    %c0_i32 = arith.constant 0 : i32
    %c0_i32_0 = arith.constant 0 : i32
    return %arg0, %c0_i32 : i32, i32
  }
}

</mosaic_0001>

<llo_original>
// kernel: tpu_custom_call.1
$region0: #{tpu_custom_call.1}
  #allocation0 [shape = 'u32[]', space=smem, size = 0x4, offset = 0x4, fixed_abs, tag = 'smem constant byte address 0x4 - core index']
  #allocation1 [shape = 'u32[144,128]{1,0:T(1,128)}', space=vmem, size = 0x12000, scoped, tag = 'internal scratch']
  %s0 = inlined_call_operand.hbm [shape: f32[1,256], index: 0, kind: input, shape index: {}]
  %s1 = inlined_call_operand.hbm [shape: f32[1,256], index: 1, kind: output, shape index: {}]
  %s2 = sld [smem:[#allocation0]]
  $region18: #{tpu_custom_call.1} parent=0
    _
  %s4 = ssub.s32 1, %s2
  %s5 = scalar_select 0, %s4, %s2
  $region1: #{tpu_custom_call.1} parent=0
    #allocation2 [shape = 'u8[1024]{0}', space=vmem, size = 0x400, scoped, tag = 'input window, operand 0, single buffered']
    #allocation3 [shape = 's32[1]{0}', space=sflag, size = 0x4, scoped, tag = 'scoped memory for tpu_custom_call.1']
    #allocation4 [shape = 's32[1]{0}', space=sflag, size = 0x4, scoped, tag = 'scoped memory for tpu_custom_call.1']
    #allocation5 [shape = 'u8[1024]{0}', space=vmem, size = 0x400, scoped, tag = 'output window, operand 0, single buffered']
    %6 = vsyncpa [#allocation3], 0
    %7 = vsyncpa [#allocation4], 0
    // Predicated region
    $region2: #{tpu_custom_call.1} parent=1 // pred_check
      _
    $region3: #{tpu_custom_call.1} parent=1 // pred_check_branch
      %9 = sbr.rel (0) target = $region5
    $region4: #{tpu_custom_call.1} parent=1 // pred_region
      %s11 = ssub.s32 32, 32
      %12 = vsyncadd [#allocation3], %s11
      %s14 = sshll.u32 [#allocation2], 4
      %s15 = int_to_ptr.vmem [resolvable:$true] %s14
      %17 = dma.hbm_to_vmem [thread:$0]  %s0, 32, %s15, [#allocation3]
    $region5: #{tpu_custom_call.1} parent=1 // pred_fallthru
      _
    // Predicated region
    $region6: #{tpu_custom_call.1} parent=1 // pred_check
      _
    $region7: #{tpu_custom_call.1} parent=1 // pred_check_branch
      %19 = sbr.rel (0) target = $region9
    $region8: #{tpu_custom_call.1} parent=1 // pred_region
      %20 = dma.done [#allocation3], 32
    $region9: #{tpu_custom_call.1} parent=1 // pred_fallthru
      _
    %v21 = vld [vmem:[#allocation2] sm:$0x3]
    %v22 = vmul.f32 %v21, 1.702
    %v23 = vxor.u32 %v22, 2147483648
    %v24 = vmul.f32 %v23, 1.442695
    %v25 = vpow.pop %v24
    %v26 = vadd.f32 %v25, 1.0
    %v27 = vrcp.pop %v26
    %v28 = vmul.f32 1.0, %v27
    %v29 = vmul.f32 %v21, %v28
    %v30 = vlaneseq
    %vm31 = vcmp.ge.s32.totalorder %v30, 0
    %vm32 = vcmp.lt.s32.totalorder %v30, 256
    %vm33 = vmand %vm31, %vm32
    %34 = vst.msk [vmem:[#allocation5] sm:$0x3] %vm33, %v29
    // Predicated region
    $region10: #{tpu_custom_call.1} parent=1 // pred_check
      _
    $region11: #{tpu_custom_call.1} parent=1 // pred_check_branch
      %36 = sbr.rel (0) target = $region13
    $region12: #{tpu_custom_call.1} parent=1 // pred_region
      %s38 = ssub.s32 32, 32
      %39 = vsyncadd [#allocation4], %s38
      %s41 = sshll.u32 [#allocation5], 4
      %s42 = int_to_ptr.vmem [resolvable:$true] %s41
      %44 = dma.vmem_to_hbm [thread:$0]  %s42, 32, %s1, [#allocation4]
    $region13: #{tpu_custom_call.1} parent=1 // pred_fallthru
      _
    // Predicated region
    $region14: #{tpu_custom_call.1} parent=1 // pred_check
      _
    $region15: #{tpu_custom_call.1} parent=1 // pred_check_branch
      %46 = sbr.rel (0) target = $region17
    $region16: #{tpu_custom_call.1} parent=1 // pred_region
      %47 = dma.done [#allocation4], 32
    $region17: #{tpu_custom_call.1} parent=1 // pred_fallthru
      _
    %48 = vsyncpa [#allocation3], 1
    %49 = vsyncpa [#allocation4], 1

</llo_original>
